<compile_context>
chip_gen: v5e
topology: v5e:2x2
jax: 0.10.0
libtpu: 0.0.40
codegen_flags: <defaults>
</compile_context>

<pallas_src>
import numpy as np
import jax
import jax.numpy as jnp
from jax.experimental import pallas as pl
from jax.experimental.pallas import tpu as pltpu

# ----------------------------- hparams (synthetic) ---------------------------
REF_ENC_FILTERS = [4, 8, 16]      # K = 3 conv layers
N_MEL_CHANNELS = 16               # n_input_dim (vae_input_type == 'mel')
E = 32                            # GRU hidden size = E // 2 = 16
BN_EPS = 1e-5


def calculate_channels(L, kernel_size, stride, pad, n_convs):
    for _ in range(n_convs):
        L = (L - kernel_size + 2 * pad) // stride + 1
    return L


# ----------------------------- CoordConv coords -------------------------------
def add_coords_with_r(x_nchw):
    # AddCoords(rank=2, with_r=True); denominators guarded against size-1 dims.
    N, _, H, W = x_nchw.shape
    hd = float(max(H - 1, 1))
    wd = float(max(W - 1, 1))
    xx = jnp.broadcast_to(jnp.arange(H, dtype=jnp.float32)[:, None], (H, W)) / hd * 2.0 - 1.0
    yy = jnp.broadcast_to(jnp.arange(W, dtype=jnp.float32)[None, :], (H, W)) / wd * 2.0 - 1.0
    rr = jnp.sqrt((xx - 0.5) ** 2 + (yy - 0.5) ** 2)
    coords = jnp.broadcast_to(jnp.stack([xx, yy, rr], axis=0)[None], (N, 3, H, W))
    return jnp.concatenate([x_nchw, coords], axis=1)


# ------------------------------- fused kernel ---------------------------------
def make_ref_encoder_kernel(n, t0, l0, conv_meta, hidden):
    """conv_meta: per layer (weight_row_start, weight_num_rows, shift_row) in conv slab."""

    def kernel(x_ref, conv_ref, gru_ref, h_out_ref):
        f32 = jnp.float32

        def sigmoid(v):
            # single (exact) EUP tanh per gate instead of exp + approx reciprocal
            return 0.5 * jnp.tanh(0.5 * v) + 0.5

        def conv_bn_relu(tap0, tap1, tap2, meta):
            w_row, w_nrows, s_row = meta
            w = conv_ref[pl.ds(w_row, w_nrows), :]        # [3*L_in, L_out], BN scale folded
            shift = conv_ref[pl.ds(s_row, 1), :]          # [1, L_out], BN shift + conv bias
            lhs = jnp.concatenate([tap0, tap1, tap2], axis=1)   # [T_out*N, 3*L_in]
            y = jnp.dot(lhs, w, preferred_element_type=f32) + shift
            return jnp.maximum(y, 0.0)                    # [T_out*N, L_out]

        def taps_from_rows(rows):
            # rows: per-time-step [N, L] values; taps for k=3 / stride=2 / pad=1.
            t_in = len(rows)
            t_out = (t_in + 1) // 2
            z = jnp.zeros_like(rows[0])
            pad = [z] + list(rows) + [z]                  # pad[i] = input time row i-1
            tap0 = jnp.concatenate([pad[2 * oh] for oh in range(t_out)], axis=0)
            tap1 = jnp.concatenate([pad[2 * oh + 1] for oh in range(t_out)], axis=0)
            tap2 = jnp.concatenate([pad[2 * oh + 2] for oh in range(t_out)], axis=0)
            return tap0, tap1, tap2

        # ---- conv layer 1: taps come straight from the even/odd input slabs ----
        t1 = t0 // 2
        even = x_ref[0]                                   # [t1*N, L0]  time rows 0,2,4,...
        odd = x_ref[1]                                    # [t1*N, L0]  time rows 1,3,5,...
        tap0 = jnp.concatenate(
            [jnp.zeros((n, l0), f32), odd[0:(t1 - 1) * n, :]], axis=0)
        y1 = conv_bn_relu(tap0, even, odd, conv_meta[0])  # [t1*N, 32]

        # ---- conv layers 2 & 3 (static unroll; T' is tiny here) ----
        # TODO(synk): for long Ty switch to VMEM scratch + lax.fori_loop and a
        # 'parallel' grid axis (vreg live-range / v7x second-TensorCore scaling).
        rows1 = [y1[oh * n:(oh + 1) * n, :] for oh in range(t1)]
        y2 = conv_bn_relu(*taps_from_rows(rows1), conv_meta[1])
        t2 = (t1 + 1) // 2
        rows2 = [y2[oh * n:(oh + 1) * n, :] for oh in range(t2)]
        feat = conv_bn_relu(*taps_from_rows(rows2), conv_meta[2])   # [t3*N, F]
        t3 = (t2 + 1) // 2

        # ---- GRU (batch_first, single layer); gate order r | z | n ----
        f_dim = feat.shape[1]
        wih = gru_ref[pl.ds(0, f_dim), :]                 # [F, 3H]
        whh = gru_ref[pl.ds(f_dim, hidden), :]            # [H, 3H]
        bih = gru_ref[pl.ds(f_dim + hidden, 1), :]        # [1, 3H]
        bhh = gru_ref[pl.ds(f_dim + hidden + 1, 1), :]    # [1, 3H]

        # input-side projections hoisted out of the recurrence & batched over time
        gi_all = jnp.dot(feat, wih, preferred_element_type=f32) + bih   # [t3*N, 3H]

        h = jnp.zeros((n, hidden), f32)
        for t in range(t3):                               # serial recurrence (t3 == 2)
            gi = gi_all[t * n:(t + 1) * n, :]
            gh = jnp.dot(h, whh, preferred_element_type=f32) + bhh
            r = sigmoid(gi[:, 0:hidden] + gh[:, 0:hidden])
            z = sigmoid(gi[:, hidden:2 * hidden] + gh[:, hidden:2 * hidden])
            ng = jnp.tanh(gi[:, 2 * hidden:3 * hidden] + r * gh[:, 2 * hidden:3 * hidden])
            h = (1.0 - z) * ng + z * h
        h_out_ref[...] = h

    return kernel


def fused_ref_encoder(x_eo, kp, n_batch, t0):
    conv_slab, gru_slab = kp["conv_slab"], kp["gru_slab"]
    hidden = kp["hidden"]
    kern = make_ref_encoder_kernel(n_batch, t0, x_eo.shape[2], kp["conv_meta"], hidden)

    def _full_spec(a):
        nd = a.ndim
        return pl.BlockSpec(a.shape, lambda i, nd=nd: (0,) * nd)

    args = (x_eo, conv_slab, gru_slab)
    return pl.pallas_call(
        kern,
        out_shape=jax.ShapeDtypeStruct((n_batch, hidden), jnp.float32),
        grid=(1,),
        in_specs=[_full_spec(a) for a in args],
        out_specs=pl.BlockSpec((n_batch, hidden), lambda i: (0, 0)),
        compiler_params=pltpu.CompilerParams(dimension_semantics=("arbitrary",)),
    )(*args)


def reference_encoder_forward(inputs, kernel_params):
    # inputs: [N, Ty, n_input_dim]  (PyTorch: view to [N, 1, Ty, n_input_dim])
    N, Ty, D = inputs.shape
    assert Ty % 2 == 0, "demo kernel assumes even Ty"  # TODO(synk): odd-Ty padding
    x = inputs.reshape(N, 1, Ty, D)
    x = add_coords_with_r(x)                               # [N, 4, Ty, D]
    C0 = x.shape[1]
    l0 = D * C0
    # time-major rows, lane = freq*C0 + channel (cheap layout-only prep)
    x_rows = jnp.transpose(x, (2, 0, 3, 1)).reshape(Ty, N, l0)
    # even/odd time split -> two contiguous 2D slabs; layer-1 conv taps = whole slabs
    x_eo = x_rows.reshape(Ty // 2, 2, N, l0).transpose(1, 0, 2, 3).reshape(2, (Ty // 2) * N, l0)
    return fused_ref_encoder(x_eo, kernel_params, N, Ty)   # [N, E//2]


# ------------------------- parameter init & preparation -----------------------
def init_raw_params(key):
    """Synthetic parameters in PyTorch layout (Conv2d [Cout,Cin,3,3], GRU [3H,F])."""
    raw = {"convs": []}
    cins = [1 + 3] + REF_ENC_FILTERS[:-1]     # CoordConv(with_r=True) adds xx, yy, rr
    couts = REF_ENC_FILTERS
    for cin, cout in zip(cins, couts):
        key, k1, k2, k3, k4, k5, k6 = jax.random.split(key, 7)
        w = jax.random.normal(k1, (cout, cin, 3, 3), jnp.float32) * 0.1
        b = jax.random.normal(k2, (cout,), jnp.float32) * 0.1
        gamma = 1.0 + 0.1 * jax.random.normal(k3, (cout,), jnp.float32)
        beta = 0.1 * jax.random.normal(k4, (cout,), jnp.float32)
        mean = 0.1 * jax.random.normal(k5, (cout,), jnp.float32)
        var = 1.0 + 0.1 * jax.random.uniform(k6, (cout,), jnp.float32)
        raw["convs"].append((w, b, gamma, beta, mean, var))
    out_freq = calculate_channels(N_MEL_CHANNELS, 3, 2, 1, len(REF_ENC_FILTERS))
    F = REF_ENC_FILTERS[-1] * out_freq
    H = E // 2
    key, kih, khh, kbi, kbh = jax.random.split(key, 5)
    raw["gru"] = (
        jax.random.normal(kih, (3 * H, F), jnp.float32) * 0.1,   # weight_ih_l0 (r|z|n)
        jax.random.normal(khh, (3 * H, H), jnp.float32) * 0.1,   # weight_hh_l0 (r|z|n)
        jax.random.normal(kbi, (3 * H,), jnp.float32) * 0.1,     # bias_ih_l0
        jax.random.normal(kbh, (3 * H,), jnp.float32) * 0.1,     # bias_hh_l0
    )
    return raw


def _fused_conv_weight(w_pt, w_in, out_order, scale_lane):
    """Fused-tap row-Toeplitz weight [3*W_in*Cin, W_out*Cout] for a 3x3/stride-2/
    pad-1 conv.  Frequency padding, stride, and the BatchNorm scale are all folded
    in at init time.  Row blocks are tap-major (time tap k=0,1,2)."""
    w_np = np.asarray(w_pt, np.float32)            # [Cout, Cin, 3, 3]
    cout, cin = w_np.shape[0], w_np.shape[1]
    w_out = (w_in - 1) // 2 + 1
    mats = np.zeros((3, w_in * cin, w_out * cout), np.float32)
    for ki in range(3):
        for ow in range(w_out):
            for kj in range(3):
                wi = 2 * ow + kj - 1
                if 0 <= wi < w_in:
                    blk = w_np[:, :, ki, kj].T            # [Cin, Cout]
                    rows = slice(wi * cin, wi * cin + cin)
                    if out_order == "wc":                 # lane = w*Cout + c
                        mats[ki, rows, ow * cout:(ow + 1) * cout] = blk
                    else:                                  # "cw": lane = c*W_out + w
                        mats[ki, rows, ow::w_out] = blk
    fused = mats.reshape(3 * w_in * cin, w_out * cout)
    return fused * np.asarray(scale_lane, np.float32)[None, :]


def prep_kernel_params(raw):
    # TODO(synk): BatchNorm2d implemented in inference mode (running stats only);
    # training-mode batch statistics are not reproduced.
    n_layers = len(raw["convs"])
    freqs = [N_MEL_CHANNELS]
    for _ in range(n_layers):
        freqs.append((freqs[-1] - 1) // 2 + 1)

    fused_ws, shift_rows = [], []
    for li, (w, b, gamma, beta, mean, var) in enumerate(raw["convs"]):
        # Last conv emits lane order (C, W') so its rows are already the GRU features
        # in PyTorch's out.transpose(1,2).view(N,T,C*W') order.
        order = "cw" if li == n_layers - 1 else "wc"
        w_in, w_out = freqs[li], freqs[li + 1]
        scale_c = np.asarray(gamma) / np.sqrt(np.asarray(var) + BN_EPS)
        shift_c = np.asarray(beta) - np.asarray(mean) * scale_c + np.asarray(b) * scale_c
        if order == "wc":
            scale_l, shift_l = np.tile(scale_c, w_out), np.tile(shift_c, w_out)
        else:
            scale_l, shift_l = np.repeat(scale_c, w_out), np.repeat(shift_c, w_out)
        fused_ws.append(_fused_conv_weight(w, w_in, order, scale_l))
        shift_rows.append(shift_l.astype(np.float32).reshape(1, -1))

    l_out = fused_ws[0].shape[1]
    assert all(fw.shape[1] == l_out for fw in fused_ws), "conv slab needs equal lane widths"

    # Pack all conv weights + shifts into ONE slab; record static row offsets.
    conv_meta, row = [], 0
    for fw in fused_ws:
        conv_meta.append([row, fw.shape[0]])
        row += fw.shape[0]
    for li in range(n_layers):
        conv_meta[li].append(row + li)                   # shift row
    conv_meta = tuple(tuple(m) for m in conv_meta)
    conv_slab = jnp.asarray(np.concatenate(fused_ws + shift_rows, axis=0), jnp.float32)

    # Pack all GRU parameters into ONE slab: [wih.T; whh.T; bih; bhh] -> [F+H+2, 3H]
    w_ih, w_hh, b_ih, b_hh = raw["gru"]
    gru_slab = jnp.concatenate(
        [jnp.asarray(w_ih).T, jnp.asarray(w_hh).T,
         jnp.asarray(b_ih).reshape(1, -1), jnp.asarray(b_hh).reshape(1, -1)],
        axis=0).astype(jnp.float32)

    return {"conv_slab": conv_slab, "gru_slab": gru_slab,
            "conv_meta": conv_meta, "hidden": int(np.asarray(w_hh).shape[1])}


# --------------------------- pure-JAX reference (check) ------------------------
def reference_forward(inputs, raw):
    hp = jax.lax.Precision.HIGHEST
    N, Ty, D = inputs.shape
    x = inputs.reshape(N, 1, Ty, D)
    x = add_coords_with_r(x)
    for (w, b, gamma, beta, mean, var) in raw["convs"]:
        x = jax.lax.conv_general_dilated(
            x, w, window_strides=(2, 2), padding=((1, 1), (1, 1)),
            dimension_numbers=("NCHW", "OIHW", "NCHW"), precision=hp)
        x = x + b[None, :, None, None]
        scale = gamma / jnp.sqrt(var + BN_EPS)
        x = (x - mean[None, :, None, None]) * scale[None, :, None, None] + beta[None, :, None, None]
        x = jnp.maximum(x, 0.0)
    feat = jnp.transpose(x, (0, 2, 1, 3)).reshape(N, x.shape[2], -1)   # [N, T', C*W']
    w_ih, w_hh, b_ih, b_hh = raw["gru"]
    H = w_hh.shape[1]
    h = jnp.zeros((N, H), jnp.float32)
    for t in range(feat.shape[1]):
        x_t = feat[:, t]
        gi = jnp.dot(x_t, w_ih.T, precision=hp) + b_ih
        gh = jnp.dot(h, w_hh.T, precision=hp) + b_hh
        r = jax.nn.sigmoid(gi[:, :H] + gh[:, :H])
        z = jax.nn.sigmoid(gi[:, H:2 * H] + gh[:, H:2 * H])
        n = jnp.tanh(gi[:, 2 * H:] + r * gh[:, 2 * H:])
        h = (1.0 - z) * n + z * h
    return h


if __name__ == "__main__":
    key = jax.random.PRNGKey(0)
    k_in, k_par = jax.random.split(key)
    N, Ty = 2, 16
    inputs = jax.random.normal(k_in, (N, Ty, N_MEL_CHANNELS), jnp.float32)

    raw = init_raw_params(k_par)
    kernel_params = prep_kernel_params(raw)

    out = reference_encoder_forward(inputs, kernel_params)
    out = jax.block_until_ready(out)

    assert out.shape == (N, E // 2), out.shape
    assert bool(jnp.all(jnp.isfinite(out))), "non-finite output"

    # Cross-check the fused kernel against a pure-JAX implementation of the module.
    ref = jax.block_until_ready(reference_forward(inputs, raw))
    max_err = float(jnp.max(jnp.abs(out - ref)))
    assert max_err < 1e-3, f"mismatch vs pure-JAX reference: max |diff| = {max_err}"

    print("KERNEL_OK")
</pallas_src>

<mosaic_0001>
module attributes {stable_mosaic.version = 11 : i64} {
  func.func @kernel(%arg0: i32, %arg1: memref<2x16x64xf32, #tpu.memory_space<vmem>>, %arg2: memref<387x32xf32, #tpu.memory_space<vmem>>, %arg3: memref<50x48xf32, #tpu.memory_space<vmem>>, %arg4: memref<2x16xf32, #tpu.memory_space<vmem>>) attributes {dimension_semantics = [#tpu.dimension_semantics<arbitrary>], iteration_bounds = array<i64: 1>, scalar_prefetch = 0 : i64, scratch_operands = 0 : i64, tpu.core_type = #tpu.core_type<tc>, window_params = [{pipeline_mode = #tpu.pipeline_mode<synchronous>, transform_indices = @transform_0, window_bounds = array<i64: 2, 16, 64>}, {pipeline_mode = #tpu.pipeline_mode<synchronous>, transform_indices = @transform_1, window_bounds = array<i64: 387, 32>}, {pipeline_mode = #tpu.pipeline_mode<synchronous>, transform_indices = @transform_2, window_bounds = array<i64: 50, 48>}, {pipeline_mode = #tpu.pipeline_mode<synchronous>, transform_indices = @transform_3, window_bounds = array<i64: 2, 16>}]} {
    %c0 = arith.constant 0 : index
    %c0_0 = arith.constant 0 : index
    %c0_1 = arith.constant 0 : index
    %0 = vector.load %arg1[%c0, %c0_0, %c0_1] : memref<2x16x64xf32, #tpu.memory_space<vmem>>, vector<1x16x64xf32>
    %1 = vector.shape_cast %0 : vector<1x16x64xf32> to vector<16x64xf32>
    %c1 = arith.constant 1 : index
    %c0_2 = arith.constant 0 : index
    %c0_3 = arith.constant 0 : index
    %2 = vector.load %arg1[%c1, %c0_2, %c0_3] : memref<2x16x64xf32, #tpu.memory_space<vmem>>, vector<1x16x64xf32>
    %3 = vector.shape_cast %2 : vector<1x16x64xf32> to vector<16x64xf32>
    %cst = arith.constant 0.000000e+00 : f32
    %4 = vector.broadcast %cst : f32 to vector<2x64xf32>
    %5 = vector.extract_strided_slice %3 {offsets = [0, 0], sizes = [14, 64], strides = [1, 1]} : vector<16x64xf32> to vector<14x64xf32>
    %6 = tpu.concatenate %4, %5 in 0 : vector<2x64xf32>, vector<14x64xf32> -> vector<16x64xf32>
    %c0_4 = arith.constant 0 : index
    %c0_5 = arith.constant 0 : index
    %7 = vector.load %arg2[%c0_4, %c0_5] : memref<387x32xf32, #tpu.memory_space<vmem>>, vector<192x32xf32>
    %c384 = arith.constant 384 : index
    %c0_6 = arith.constant 0 : index
    %8 = vector.load %arg2[%c384, %c0_6] : memref<387x32xf32, #tpu.memory_space<vmem>>, vector<1x32xf32>
    %9 = tpu.concatenate %6, %1, %3 in 1 : vector<16x64xf32>, vector<16x64xf32>, vector<16x64xf32> -> vector<16x192xf32>
    %cst_7 = arith.constant dense<0.000000e+00> : vector<16x32xf32>
    %10 = tpu.matmul %9, %7, %cst_7 {dimension_numbers = #tpu.dot_dimension_numbers<[1], [0], [0], [1], [0, 0, 1, 1], [], []>} : vector<16x192xf32>, vector<192x32xf32>, vector<16x32xf32> -> vector<16x32xf32>
    %11 = vector.broadcast %8 : vector<1x32xf32> to vector<16x32xf32>
    %12 = arith.addf %10, %11 : vector<16x32xf32>
    %cst_8 = arith.constant 0.000000e+00 : f32
    %13 = vector.broadcast %cst_8 : f32 to vector<16x32xf32>
    %14 = arith.maximumf %12, %13 : vector<16x32xf32>
    %15 = vector.extract_strided_slice %14 {offsets = [0, 0], sizes = [2, 32], strides = [1, 1]} : vector<16x32xf32> to vector<2x32xf32>
    %16 = vector.extract_strided_slice %14 {offsets = [2, 0], sizes = [2, 32], strides = [1, 1]} : vector<16x32xf32> to vector<2x32xf32>
    %17 = vector.extract_strided_slice %14 {offsets = [4, 0], sizes = [2, 32], strides = [1, 1]} : vector<16x32xf32> to vector<2x32xf32>
    %18 = vector.extract_strided_slice %14 {offsets = [6, 0], sizes = [2, 32], strides = [1, 1]} : vector<16x32xf32> to vector<2x32xf32>
    %19 = vector.extract_strided_slice %14 {offsets = [8, 0], sizes = [2, 32], strides = [1, 1]} : vector<16x32xf32> to vector<2x32xf32>
    %20 = vector.extract_strided_slice %14 {offsets = [10, 0], sizes = [2, 32], strides = [1, 1]} : vector<16x32xf32> to vector<2x32xf32>
    %21 = vector.extract_strided_slice %14 {offsets = [12, 0], sizes = [2, 32], strides = [1, 1]} : vector<16x32xf32> to vector<2x32xf32>
    %22 = vector.extract_strided_slice %14 {offsets = [14, 0], sizes = [2, 32], strides = [1, 1]} : vector<16x32xf32> to vector<2x32xf32>
    %cst_9 = arith.constant 0.000000e+00 : f32
    %23 = vector.broadcast %cst_9 : f32 to vector<2x32xf32>
    %24 = tpu.concatenate %23, %16, %18, %20 in 0 : vector<2x32xf32>, vector<2x32xf32>, vector<2x32xf32>, vector<2x32xf32> -> vector<8x32xf32>
    %25 = tpu.concatenate %15, %17, %19, %21 in 0 : vector<2x32xf32>, vector<2x32xf32>, vector<2x32xf32>, vector<2x32xf32> -> vector<8x32xf32>
    %26 = tpu.concatenate %16, %18, %20, %22 in 0 : vector<2x32xf32>, vector<2x32xf32>, vector<2x32xf32>, vector<2x32xf32> -> vector<8x32xf32>
    %c192 = arith.constant 192 : index
    %c0_10 = arith.constant 0 : index
    %27 = vector.load %arg2[%c192, %c0_10] : memref<387x32xf32, #tpu.memory_space<vmem>>, vector<96x32xf32>
    %c385 = arith.constant 385 : index
    %c0_11 = arith.constant 0 : index
    %28 = vector.load %arg2[%c385, %c0_11] : memref<387x32xf32, #tpu.memory_space<vmem>>, vector<1x32xf32>
    %29 = tpu.concatenate %24, %25, %26 in 1 : vector<8x32xf32>, vector<8x32xf32>, vector<8x32xf32> -> vector<8x96xf32>
    %cst_12 = arith.constant dense<0.000000e+00> : vector<8x32xf32>
    %30 = tpu.matmul %29, %27, %cst_12 {dimension_numbers = #tpu.dot_dimension_numbers<[1], [0], [0], [1], [0, 0, 1, 1], [], []>} : vector<8x96xf32>, vector<96x32xf32>, vector<8x32xf32> -> vector<8x32xf32>
    %31 = vector.broadcast %28 : vector<1x32xf32> to vector<8x32xf32>
    %32 = arith.addf %30, %31 : vector<8x32xf32>
    %cst_13 = arith.constant 0.000000e+00 : f32
    %33 = vector.broadcast %cst_13 : f32 to vector<8x32xf32>
    %34 = arith.maximumf %32, %33 : vector<8x32xf32>
    %35 = vector.extract_strided_slice %34 {offsets = [0, 0], sizes = [2, 32], strides = [1, 1]} : vector<8x32xf32> to vector<2x32xf32>
    %36 = vector.extract_strided_slice %34 {offsets = [2, 0], sizes = [2, 32], strides = [1, 1]} : vector<8x32xf32> to vector<2x32xf32>
    %37 = vector.extract_strided_slice %34 {offsets = [4, 0], sizes = [2, 32], strides = [1, 1]} : vector<8x32xf32> to vector<2x32xf32>
    %38 = vector.extract_strided_slice %34 {offsets = [6, 0], sizes = [2, 32], strides = [1, 1]} : vector<8x32xf32> to vector<2x32xf32>
    %cst_14 = arith.constant 0.000000e+00 : f32
    %39 = vector.broadcast %cst_14 : f32 to vector<2x32xf32>
    %40 = tpu.concatenate %39, %36 in 0 : vector<2x32xf32>, vector<2x32xf32> -> vector<4x32xf32>
    %41 = tpu.concatenate %35, %37 in 0 : vector<2x32xf32>, vector<2x32xf32> -> vector<4x32xf32>
    %42 = tpu.concatenate %36, %38 in 0 : vector<2x32xf32>, vector<2x32xf32> -> vector<4x32xf32>
    %c288 = arith.constant 288 : index
    %c0_15 = arith.constant 0 : index
    %43 = vector.load %arg2[%c288, %c0_15] : memref<387x32xf32, #tpu.memory_space<vmem>>, vector<96x32xf32>
    %c386 = arith.constant 386 : index
    %c0_16 = arith.constant 0 : index
    %44 = vector.load %arg2[%c386, %c0_16] : memref<387x32xf32, #tpu.memory_space<vmem>>, vector<1x32xf32>
    %45 = tpu.concatenate %40, %41, %42 in 1 : vector<4x32xf32>, vector<4x32xf32>, vector<4x32xf32> -> vector<4x96xf32>
    %cst_17 = arith.constant dense<0.000000e+00> : vector<4x32xf32>
    %46 = tpu.matmul %45, %43, %cst_17 {dimension_numbers = #tpu.dot_dimension_numbers<[1], [0], [0], [1], [0, 0, 1, 1], [], []>} : vector<4x96xf32>, vector<96x32xf32>, vector<4x32xf32> -> vector<4x32xf32>
    %47 = vector.broadcast %44 : vector<1x32xf32> to vector<4x32xf32>
    %48 = arith.addf %46, %47 : vector<4x32xf32>
    %cst_18 = arith.constant 0.000000e+00 : f32
    %49 = vector.broadcast %cst_18 : f32 to vector<4x32xf32>
    %50 = arith.maximumf %48, %49 : vector<4x32xf32>
    %c0_19 = arith.constant 0 : index
    %c0_20 = arith.constant 0 : index
    %51 = vector.load %arg3[%c0_19, %c0_20] : memref<50x48xf32, #tpu.memory_space<vmem>>, vector<32x48xf32>
    %c32 = arith.constant 32 : index
    %c0_21 = arith.constant 0 : index
    %52 = vector.load %arg3[%c32, %c0_21] : memref<50x48xf32, #tpu.memory_space<vmem>>, vector<16x48xf32>
    %c48 = arith.constant 48 : index
    %c0_22 = arith.constant 0 : index
    %53 = vector.load %arg3[%c48, %c0_22] : memref<50x48xf32, #tpu.memory_space<vmem>>, vector<1x48xf32>
    %c49 = arith.constant 49 : index
    %c0_23 = arith.constant 0 : index
    %54 = vector.load %arg3[%c49, %c0_23] : memref<50x48xf32, #tpu.memory_space<vmem>>, vector<1x48xf32>
    %cst_24 = arith.constant dense<0.000000e+00> : vector<4x48xf32>
    %55 = tpu.matmul %50, %51, %cst_24 {dimension_numbers = #tpu.dot_dimension_numbers<[1], [0], [0], [1], [0, 0, 1, 1], [], []>} : vector<4x32xf32>, vector<32x48xf32>, vector<4x48xf32> -> vector<4x48xf32>
    %56 = vector.broadcast %53 : vector<1x48xf32> to vector<4x48xf32>
    %57 = arith.addf %55, %56 : vector<4x48xf32>
    %cst_25 = arith.constant 0.000000e+00 : f32
    %58 = vector.broadcast %cst_25 : f32 to vector<2x16xf32>
    %59 = vector.extract_strided_slice %57 {offsets = [0, 0], sizes = [2, 48], strides = [1, 1]} : vector<4x48xf32> to vector<2x48xf32>
    %cst_26 = arith.constant dense<0.000000e+00> : vector<2x48xf32>
    %60 = tpu.matmul %58, %52, %cst_26 {dimension_numbers = #tpu.dot_dimension_numbers<[1], [0], [0], [1], [0, 0, 1, 1], [], []>} : vector<2x16xf32>, vector<16x48xf32>, vector<2x48xf32> -> vector<2x48xf32>
    %61 = vector.broadcast %54 : vector<1x48xf32> to vector<2x48xf32>
    %62 = arith.addf %60, %61 : vector<2x48xf32>
    %63 = vector.extract_strided_slice %59 {offsets = [0, 0], sizes = [2, 16], strides = [1, 1]} : vector<2x48xf32> to vector<2x16xf32>
    %64 = vector.extract_strided_slice %62 {offsets = [0, 0], sizes = [2, 16], strides = [1, 1]} : vector<2x48xf32> to vector<2x16xf32>
    %65 = arith.addf %63, %64 : vector<2x16xf32>
    %cst_27 = arith.constant 5.000000e-01 : f32
    %66 = vector.broadcast %cst_27 : f32 to vector<2x16xf32>
    %67 = arith.mulf %66, %65 : vector<2x16xf32>
    %68 = math.tanh %67 : vector<2x16xf32>
    %cst_28 = arith.constant 5.000000e-01 : f32
    %69 = vector.broadcast %cst_28 : f32 to vector<2x16xf32>
    %70 = arith.mulf %69, %68 : vector<2x16xf32>
    %cst_29 = arith.constant 5.000000e-01 : f32
    %71 = vector.broadcast %cst_29 : f32 to vector<2x16xf32>
    %72 = arith.addf %70, %71 : vector<2x16xf32>
    %73 = vector.extract_strided_slice %59 {offsets = [0, 16], sizes = [2, 16], strides = [1, 1]} : vector<2x48xf32> to vector<2x16xf32>
    %74 = vector.extract_strided_slice %62 {offsets = [0, 16], sizes = [2, 16], strides = [1, 1]} : vector<2x48xf32> to vector<2x16xf32>
    %75 = arith.addf %73, %74 : vector<2x16xf32>
    %cst_30 = arith.constant 5.000000e-01 : f32
    %76 = vector.broadcast %cst_30 : f32 to vector<2x16xf32>
    %77 = arith.mulf %76, %75 : vector<2x16xf32>
    %78 = math.tanh %77 : vector<2x16xf32>
    %cst_31 = arith.constant 5.000000e-01 : f32
    %79 = vector.broadcast %cst_31 : f32 to vector<2x16xf32>
    %80 = arith.mulf %79, %78 : vector<2x16xf32>
    %cst_32 = arith.constant 5.000000e-01 : f32
    %81 = vector.broadcast %cst_32 : f32 to vector<2x16xf32>
    %82 = arith.addf %80, %81 : vector<2x16xf32>
    %83 = vector.extract_strided_slice %59 {offsets = [0, 32], sizes = [2, 16], strides = [1, 1]} : vector<2x48xf32> to vector<2x16xf32>
    %84 = vector.extract_strided_slice %62 {offsets = [0, 32], sizes = [2, 16], strides = [1, 1]} : vector<2x48xf32> to vector<2x16xf32>
    %85 = arith.mulf %72, %84 : vector<2x16xf32>
    %86 = arith.addf %83, %85 : vector<2x16xf32>
    %87 = math.tanh %86 : vector<2x16xf32>
    %cst_33 = arith.constant 1.000000e+00 : f32
    %88 = vector.broadcast %cst_33 : f32 to vector<2x16xf32>
    %89 = arith.subf %88, %82 : vector<2x16xf32>
    %90 = arith.mulf %89, %87 : vector<2x16xf32>
    %91 = arith.mulf %82, %58 : vector<2x16xf32>
    %92 = arith.addf %90, %91 : vector<2x16xf32>
    %93 = vector.extract_strided_slice %57 {offsets = [2, 0], sizes = [2, 48], strides = [1, 1]} : vector<4x48xf32> to vector<2x48xf32>
    %cst_34 = arith.constant dense<0.000000e+00> : vector<2x48xf32>
    %94 = tpu.matmul %92, %52, %cst_34 {dimension_numbers = #tpu.dot_dimension_numbers<[1], [0], [0], [1], [0, 0, 1, 1], [], []>} : vector<2x16xf32>, vector<16x48xf32>, vector<2x48xf32> -> vector<2x48xf32>
    %95 = vector.broadcast %54 : vector<1x48xf32> to vector<2x48xf32>
    %96 = arith.addf %94, %95 : vector<2x48xf32>
    %97 = vector.extract_strided_slice %93 {offsets = [0, 0], sizes = [2, 16], strides = [1, 1]} : vector<2x48xf32> to vector<2x16xf32>
    %98 = vector.extract_strided_slice %96 {offsets = [0, 0], sizes = [2, 16], strides = [1, 1]} : vector<2x48xf32> to vector<2x16xf32>
    %99 = arith.addf %97, %98 : vector<2x16xf32>
    %cst_35 = arith.constant 5.000000e-01 : f32
    %100 = vector.broadcast %cst_35 : f32 to vector<2x16xf32>
    %101 = arith.mulf %100, %99 : vector<2x16xf32>
    %102 = math.tanh %101 : vector<2x16xf32>
    %cst_36 = arith.constant 5.000000e-01 : f32
    %103 = vector.broadcast %cst_36 : f32 to vector<2x16xf32>
    %104 = arith.mulf %103, %102 : vector<2x16xf32>
    %cst_37 = arith.constant 5.000000e-01 : f32
    %105 = vector.broadcast %cst_37 : f32 to vector<2x16xf32>
    %106 = arith.addf %104, %105 : vector<2x16xf32>
    %107 = vector.extract_strided_slice %93 {offsets = [0, 16], sizes = [2, 16], strides = [1, 1]} : vector<2x48xf32> to vector<2x16xf32>
    %108 = vector.extract_strided_slice %96 {offsets = [0, 16], sizes = [2, 16], strides = [1, 1]} : vector<2x48xf32> to vector<2x16xf32>
    %109 = arith.addf %107, %108 : vector<2x16xf32>
    %cst_38 = arith.constant 5.000000e-01 : f32
    %110 = vector.broadcast %cst_38 : f32 to vector<2x16xf32>
    %111 = arith.mulf %110, %109 : vector<2x16xf32>
    %112 = math.tanh %111 : vector<2x16xf32>
    %cst_39 = arith.constant 5.000000e-01 : f32
    %113 = vector.broadcast %cst_39 : f32 to vector<2x16xf32>
    %114 = arith.mulf %113, %112 : vector<2x16xf32>
    %cst_40 = arith.constant 5.000000e-01 : f32
    %115 = vector.broadcast %cst_40 : f32 to vector<2x16xf32>
    %116 = arith.addf %114, %115 : vector<2x16xf32>
    %117 = vector.extract_strided_slice %93 {offsets = [0, 32], sizes = [2, 16], strides = [1, 1]} : vector<2x48xf32> to vector<2x16xf32>
    %118 = vector.extract_strided_slice %96 {offsets = [0, 32], sizes = [2, 16], strides = [1, 1]} : vector<2x48xf32> to vector<2x16xf32>
    %119 = arith.mulf %106, %118 : vector<2x16xf32>
    %120 = arith.addf %117, %119 : vector<2x16xf32>
    %121 = math.tanh %120 : vector<2x16xf32>
    %cst_41 = arith.constant 1.000000e+00 : f32
    %122 = vector.broadcast %cst_41 : f32 to vector<2x16xf32>
    %123 = arith.subf %122, %116 : vector<2x16xf32>
    %124 = arith.mulf %123, %121 : vector<2x16xf32>
    %125 = arith.mulf %116, %92 : vector<2x16xf32>
    %126 = arith.addf %124, %125 : vector<2x16xf32>
    %c0_42 = arith.constant 0 : index
    %c0_43 = arith.constant 0 : index
    %127 = vector.load %arg4[%c0_42, %c0_43] : memref<2x16xf32, #tpu.memory_space<vmem>>, vector<2x16xf32>
    tpu.vector_store %arg4[%c0_42, %c0_43], %126 {strides = array<i32>} : memref<2x16xf32, #tpu.memory_space<vmem>>, vector<2x16xf32>,
    return
  }
  func.func @transform_0(%arg0: i32) -> (i32, i32, i32) {
    %c0_i32 = arith.constant 0 : i32
    %c0_i32_0 = arith.constant 0 : i32
    %c0_i32_1 = arith.constant 0 : i32
    %c0_i32_2 = arith.constant 0 : i32
    return %c0_i32, %c0_i32_0, %c0_i32_1 : i32, i32, i32
  }
  func.func @transform_1(%arg0: i32) -> (i32, i32) {
    %c0_i32 = arith.constant 0 : i32
    %c0_i32_0 = arith.constant 0 : i32
    %c0_i32_1 = arith.constant 0 : i32
    return %c0_i32, %c0_i32_0 : i32, i32
  }
  func.func @transform_2(%arg0: i32) -> (i32, i32) {
    %c0_i32 = arith.constant 0 : i32
    %c0_i32_0 = arith.constant 0 : i32
    %c0_i32_1 = arith.constant 0 : i32
    return %c0_i32, %c0_i32_0 : i32, i32
  }
  func.func @transform_3(%arg0: i32) -> (i32, i32) {
    %c0_i32 = arith.constant 0 : i32
    %c0_i32_0 = arith.constant 0 : i32
    %c0_i32_1 = arith.constant 0 : i32
    return %c0_i32, %c0_i32_0 : i32, i32
  }
}

</mosaic_0001>

<llo_original>
// kernel: tpu_custom_call.1
$region0: #{tpu_custom_call.1}
  #allocation0 [shape = 'u32[]', space=smem, size = 0x4, offset = 0x4, fixed_abs, tag = 'smem constant byte address 0x4 - core index']
  #allocation1 [shape = 'u32[72,128]{1,0:T(1,128)}', space=vmem, size = 0x9000, scoped, tag = 'internal scratch']
  %s0 = inlined_call_operand.vmem [shape: f32[2,16,64], index: 0, kind: input, shape index: {}]
  %s1 = inlined_call_operand.vmem [shape: f32[387,32], index: 1, kind: input, shape index: {}]
  %s2 = inlined_call_operand.vmem [shape: f32[50,48], index: 2, kind: input, shape index: {}]
  %s3 = inlined_call_operand.hbm [shape: f32[2,16], index: 3, kind: output, shape index: {}]
  %s4 = sld [smem:[#allocation0]]
  $region22: #{tpu_custom_call.1} parent=0
    _
  %s6 = ssub.s32 1, %s4
  %s7 = scalar_select 0, %s6, %s4
  $region1: #{tpu_custom_call.1} parent=0
    #allocation2 [shape = 'u8[1024]{0}', space=vmem, size = 0x400, scoped, tag = 'output window, operand 0, single buffered']
    #allocation3 [shape = 's32[1]{0}', space=sflag, size = 0x4, scoped, tag = 'scoped memory for tpu_custom_call.1']
    %8 = vsyncpa [#allocation3], 0
    // Predicated region
    $region2: #{tpu_custom_call.1} parent=1 // pred_check
      _
    $region3: #{tpu_custom_call.1} parent=1 // pred_check_branch
      %10 = sbr.rel (0) target = $region5
    $region4: #{tpu_custom_call.1} parent=1 // pred_region
      _
    $region5: #{tpu_custom_call.1} parent=1 // pred_fallthru
      _
    // Predicated region
    $region6: #{tpu_custom_call.1} parent=1 // pred_check
      _
    $region7: #{tpu_custom_call.1} parent=1 // pred_check_branch
      %12 = sbr.rel (0) target = $region9
    $region8: #{tpu_custom_call.1} parent=1 // pred_region
      _
    $region9: #{tpu_custom_call.1} parent=1 // pred_fallthru
      _
    // Predicated region
    $region10: #{tpu_custom_call.1} parent=1 // pred_check
      _
    $region11: #{tpu_custom_call.1} parent=1 // pred_check_branch
      %14 = sbr.rel (0) target = $region13
    $region12: #{tpu_custom_call.1} parent=1 // pred_region
      _
    $region13: #{tpu_custom_call.1} parent=1 // pred_fallthru
      _
    %v15 = vld [vmem:[%s0] sm:$0xff]
    %v16 = vld [vmem:[%s0 + $0x8] sm:$0xff]
    %s17 = scalar_lea.vmem %s0, 16
    %v18 = vld [vmem:[%s17] sm:$0xff]
    %v19 = vld [vmem:[%s17 + $0x8] sm:$0xff]
    %vm22 = vcmask 1041408
    %v23 = vrot.slane %v18, 6
    %v24 = vrot.slane %v19, 6
    %v25 = vsel %vm22, %v23, %v24
    %v28 = vsel %vm22, 0.0, %v23
    %v29 = vld [vmem:[%s1] sm:$0xff]
    %v30 = vld [vmem:[%s1 + $0x8] sm:$0xff]
    %v31 = vld [vmem:[%s1 + $0x10] sm:$0xff]
    %v32 = vld [vmem:[%s1 + $0x18] sm:$0xff]
    %v33 = vld [vmem:[%s1 + $0x20] sm:$0xff]
    %v34 = vld [vmem:[%s1 + $0x28] sm:$0xff]
    %v35 = vld [vmem:[%s1 + $0x30] sm:$0xff]
    %v36 = vld [vmem:[%s1 + $0x38] sm:$0xff]
    %v37 = vld [vmem:[%s1 + $0x40] sm:$0xff]
    %v38 = vld [vmem:[%s1 + $0x48] sm:$0xff]
    %v39 = vld [vmem:[%s1 + $0x50] sm:$0xff]
    %v40 = vld [vmem:[%s1 + $0x58] sm:$0xff]
    %v41 = vld [vmem:[%s1 + $0x60] sm:$0xff]
    %v42 = vld [vmem:[%s1 + $0x68] sm:$0xff]
    %v43 = vld [vmem:[%s1 + $0x70] sm:$0xff]
    %v44 = vld [vmem:[%s1 + $0x78] sm:$0xff]
    %v45 = vld [vmem:[%s1 + $0x80] sm:$0xff]
    %v46 = vld [vmem:[%s1 + $0x88] sm:$0xff]
    %v47 = vld [vmem:[%s1 + $0x90] sm:$0xff]
    %v48 = vld [vmem:[%s1 + $0x98] sm:$0xff]
    %v49 = vld [vmem:[%s1 + $0xa0] sm:$0xff]
    %v50 = vld [vmem:[%s1 + $0xa8] sm:$0xff]
    %v51 = vld [vmem:[%s1 + $0xb0] sm:$0xff]
    %v52 = vld [vmem:[%s1 + $0xb8] sm:$0xff]
    %v53 = vld [vmem:[%s1 + $0x180] sm:$0x1]
    %56 = vrot.lane.b32.xlu0 %v15, 64
    %v57 = vpop.permute.xlu0 %56
    %58 = vrot.lane.b32.xlu0 %v16, 64
    %v59 = vpop.permute.xlu0 %58
    %vm62 = vcmask 523264
    %v63 = vsel %vm62, %v28, %v57
    %v64 = vsel %vm62, %v25, %v59
    %v65 = vperm.slane %v53, 0
    %v66 = vsel %vm62, %v18, 0
    %v68 = vsel %vm62, %v19, 0
    %70 = vmatpush.msra.mxu0 %v44
    %71 = vmatpush.msra.mxu0 %v43
    %72 = vmatpush.msra.mxu0 %v42
    %73 = vmatpush.msra.mxu0 %v41
    %74 = vmatpush.msra.mxu0 %v40
    %75 = vmatpush.msra.mxu0 %v39
    %76 = vmatpush.msra.mxu0 %v38
    %77 = vmatpush.msra.mxu0 %v37
    %78 = vmatpush.msra.mxu0 %v36
    %79 = vmatpush.msra.mxu0 %v35
    %80 = vmatpush.msra.mxu0 %v34
    %81 = vmatpush.msra.mxu0 %v33
    %82 = vmatpush.msra.mxu0 %v32
    %83 = vmatpush.msra.mxu0 %v31
    %84 = vmatpush.msra.mxu0 %v30
    %85 = vmatpush.msra.mxu0 %v29
    %86 = vmatmul.f32.gmra.mxu0 %v63
    %v87 = vpop.f32.mrf.mxu0
    %v88 = vadd.f32 %v65, %v87
    %89 = vmatmul.f32.gmra.mxu0 %v64
    %v90 = vpop.f32.mrf.mxu0
    %v91 = vadd.f32 %v65, %v90
    %92 = vdwg.mxu0
    %93 = vmatpush.msra.mxu0 0.0
    %94 = vmatpush.msra.mxu0 0.0
    %95 = vmatpush.msra.mxu0 0.0
    %96 = vmatpush.msra.mxu0 0.0
    %97 = vmatpush.msra.mxu0 0.0
    %98 = vmatpush.msra.mxu0 0.0
    %99 = vmatpush.msra.mxu0 0.0
    %100 = vmatpush.msra.mxu0 0.0
    %101 = vmatpush.msra.mxu0 %v52
    %102 = vmatpush.msra.mxu0 %v51
    %103 = vmatpush.msra.mxu0 %v50
    %104 = vmatpush.msra.mxu0 %v49
    %105 = vmatpush.msra.mxu0 %v48
    %106 = vmatpush.msra.mxu0 %v47
    %107 = vmatpush.msra.mxu0 %v46
    %108 = vmatpush.msra.mxu0 %v45
    %109 = vmatmul.f32.gmra.mxu0 %v66
    %v110 = vpop.f32.mrf.mxu0
    %v111 = vadd.f32 %v88, %v110
    %112 = vmatmul.f32.gmra.mxu0 %v68
    %v113 = vpop.f32.mrf.mxu0
    %v114 = vadd.f32 %v91, %v113
    %115 = vdwg.mxu0
    %v116 = vmax.f32 %v111, 0.0
    %v117 = vmax.f32 %v114, 0.0
    %v119 = vrot.slane %v116, 2
    %v122 = vrot.slane %v117, 4
    %v124 = vsel %vm22, 0.0, %v116
    %vm125 = vcmask 1043456
    %v126 = vsel %vm125, %v124, %v119
    %vm127 = vcmask 1045504
    %v128 = vsel %vm127, %v126, %v122
    %v129 = vrot.slane %v117, 6
    %v131 = vsel %vm22, %v116, %v119
    %v132 = vsel %vm125, %v131, %v122
    %v133 = vsel %vm127, %v132, %v129
    %v134 = vrot.slane %v116, 4
    %v136 = vsel %vm22, %v119, %v134
    %v137 = vsel %vm125, %v136, %v129
    %v138 = vsel %vm127, %v137, %v117
    %v139 = vld [vmem:[%s1 + $0xc0] sm:$0xff]
    %v140 = vld [vmem:[%s1 + $0xc8] sm:$0xff]
    %v141 = vld [vmem:[%s1 + $0xd0] sm:$0xff]
    %v142 = vld [vmem:[%s1 + $0xd8] sm:$0xff]
    %v143 = vld [vmem:[%s1 + $0xe0] sm:$0xff]
    %v144 = vld [vmem:[%s1 + $0xe8] sm:$0xff]
    %v145 = vld [vmem:[%s1 + $0xf0] sm:$0xff]
    %v146 = vld [vmem:[%s1 + $0xf8] sm:$0xff]
    %v147 = vld [vmem:[%s1 + $0x100] sm:$0xff]
    %v148 = vld [vmem:[%s1 + $0x108] sm:$0xff]
    %v149 = vld [vmem:[%s1 + $0x110] sm:$0xff]
    %v150 = vld [vmem:[%s1 + $0x118] sm:$0xff]
    %v151 = vld [vmem:[%s1 + $0x181] sm:$0x1]
    %153 = vrot.lane.b32.xlu0 %v133, 32
    %v154 = vpop.permute.xlu0 %153
    %157 = vrot.lane.b32.xlu0 %v138, 64
    %v158 = vpop.permute.xlu0 %157
    %vm160 = vcmask 261120
    %v161 = vsel %vm160, %v128, %v154
    %v162 = vsel %vm62, %v161, %v158
    %v163 = vperm.slane %v151, 0
    %vm164 = vcmask 785408
    %v166 = vsel %vm164, %v162, 0
    %168 = vmatpush.msra.mxu0 0.0
    %169 = vmatpush.msra.mxu0 0.0
    %170 = vmatpush.msra.mxu0 0.0
    %171 = vmatpush.msra.mxu0 0.0
    %172 = vmatpush.msra.mxu0 %v150
    %173 = vmatpush.msra.mxu0 %v149
    %174 = vmatpush.msra.mxu0 %v148
    %175 = vmatpush.msra.mxu0 %v147
    %176 = vmatpush.msra.mxu0 %v146
    %177 = vmatpush.msra.mxu0 %v145
    %178 = vmatpush.msra.mxu0 %v144
    %179 = vmatpush.msra.mxu0 %v143
    %180 = vmatpush.msra.mxu0 %v142
    %181 = vmatpush.msra.mxu0 %v141
    %182 = vmatpush.msra.mxu0 %v140
    %183 = vmatpush.msra.mxu0 %v139
    %184 = vmatmul.f32.gmra.mxu0 %v166
    %v185 = vpop.f32.mrf.mxu0
    %v186 = vadd.f32 %v163, %v185
    %187 = vdwg.mxu0
    %v188 = vmax.f32 %v186, 0.0
    %v189 = vsel %vm22, 0.0, %v188
    %v191 = vrot.slane %v188, 2
    %v193 = vsel %vm22, %v188, %v191
    %v194 = vrot.slane %v188, 4
    %v196 = vsel %vm22, %v191, %v194
    %v197 = vld [vmem:[%s1 + $0x120] sm:$0xff]
    %v198 = vld [vmem:[%s1 + $0x128] sm:$0xff]
    %v199 = vld [vmem:[%s1 + $0x130] sm:$0xff]
    %v200 = vld [vmem:[%s1 + $0x138] sm:$0xff]
    %v201 = vld [vmem:[%s1 + $0x140] sm:$0xff]
    %v202 = vld [vmem:[%s1 + $0x148] sm:$0xff]
    %v203 = vld [vmem:[%s1 + $0x150] sm:$0xff]
    %v204 = vld [vmem:[%s1 + $0x158] sm:$0xff]
    %v205 = vld [vmem:[%s1 + $0x160] sm:$0xff]
    %v206 = vld [vmem:[%s1 + $0x168] sm:$0xff]
    %v207 = vld [vmem:[%s1 + $0x170] sm:$0xff]
    %v208 = vld [vmem:[%s1 + $0x178] sm:$0xff]
    %v209 = vld [vmem:[%s1 + $0x182] sm:$0x1]
    %211 = vrot.lane.b32.xlu0 %v193, 32
    %v212 = vpop.permute.xlu0 %211
    %215 = vrot.lane.b32.xlu0 %v196, 64
    %v216 = vpop.permute.xlu0 %215
    %v218 = vsel %vm160, %v189, %v212
    %v219 = vsel %vm62, %v218, %v216
    %v220 = vperm.slane %v209, 0
    %v222 = vsel %vm164, %v219, 0
    %224 = vmatpush.msra.mxu0 0.0
    %225 = vmatpush.msra.mxu0 0.0
    %226 = vmatpush.msra.mxu0 0.0
    %227 = vmatpush.msra.mxu0 0.0
    %228 = vmatpush.msra.mxu0 %v208
    %229 = vmatpush.msra.mxu0 %v207
    %230 = vmatpush.msra.mxu0 %v206
    %231 = vmatpush.msra.mxu0 %v205
    %232 = vmatpush.msra.mxu0 %v204
    %233 = vmatpush.msra.mxu0 %v203
    %234 = vmatpush.msra.mxu0 %v202
    %235 = vmatpush.msra.mxu0 %v201
    %236 = vmatpush.msra.mxu0 %v200
    %237 = vmatpush.msra.mxu0 %v199
    %238 = vmatpush.msra.mxu0 %v198
    %239 = vmatpush.msra.mxu0 %v197
    %240 = vmatmul.f32.gmra.mxu0 %v222
    %v241 = vpop.f32.mrf.mxu0
    %v242 = vadd.f32 %v220, %v241
    %243 = vdwg.mxu0
    %v244 = vmax.f32 %v242, 0.0
    %v245 = vld [vmem:[%s2] sm:$0xff]
    %v246 = vld [vmem:[%s2 + $0x8] sm:$0xff]
    %v247 = vld [vmem:[%s2 + $0x10] sm:$0xff]
    %v248 = vld [vmem:[%s2 + $0x18] sm:$0xff]
    %v249 = vld [vmem:[%s2 + $0x20] sm:$0xff]
    %v250 = vld [vmem:[%s2 + $0x28] sm:$0xff]
    %v251 = vld [vmem:[%s2 + $0x30] sm:$0x1]
    %v252 = vld [vmem:[%s2 + $0x31] sm:$0x1]
    %v253 = vperm.slane %v251, 0
    %v255 = vsel %vm160, %v244, 0
    %257 = vmatpush.msra.mxu0 0.0
    %258 = vmatpush.msra.mxu0 0.0
    %259 = vmatpush.msra.mxu0 0.0
    %260 = vmatpush.msra.mxu0 0.0
    %261 = vmatpush.msra.mxu0 0.0
    %262 = vmatpush.msra.mxu0 0.0
    %263 = vmatpush.msra.mxu0 0.0
    %264 = vmatpush.msra.mxu0 0.0
    %265 = vmatpush.msra.mxu0 0.0
    %266 = vmatpush.msra.mxu0 0.0
    %267 = vmatpush.msra.mxu0 0.0
    %268 = vmatpush.msra.mxu0 0.0
    %269 = vmatpush.msra.mxu0 %v248
    %270 = vmatpush.msra.mxu0 %v247
    %271 = vmatpush.msra.mxu0 %v246
    %272 = vmatpush.msra.mxu0 %v245
    %273 = vmatmul.f32.gmra.mxu0 %v255
    %v274 = vpop.f32.mrf.mxu0
    %v275 = vadd.f32 %v253, %v274
    %276 = vdwg.mxu0
    %v277 = vperm.slane %v252, 0
    %vm278 = vcmask 130048
    %v280 = vsel %vm278, 0.0, 0
    %282 = vmatpush.msra.mxu0 0.0
    %283 = vmatpush.msra.mxu0 0.0
    %284 = vmatpush.msra.mxu0 0.0
    %285 = vmatpush.msra.mxu0 0.0
    %286 = vmatpush.msra.mxu0 0.0
    %287 = vmatpush.msra.mxu0 0.0
    %288 = vmatpush.msra.mxu0 0.0
    %289 = vmatpush.msra.mxu0 0.0
    %290 = vmatpush.msra.mxu0 0.0
    %291 = vmatpush.msra.mxu0 0.0
    %292 = vmatpush.msra.mxu0 0.0
    %293 = vmatpush.msra.mxu0 0.0
    %294 = vmatpush.msra.mxu0 0.0
    %295 = vmatpush.msra.mxu0 0.0
    %296 = vmatpush.msra.mxu0 %v250
    %297 = vmatpush.msra.mxu0 %v249
    %298 = vmatmul.f32.gmra.mxu0 %v280
    %v299 = vpop.f32.mrf.mxu0
    %v300 = vadd.f32 %v277, %v299
    %301 = vdwg.mxu0
    %v302 = vadd.f32 %v275, %v300
    %v303 = vmul.f32 %v302, 0.5
    %v304 = vtanh.pop %v303
    %v305 = vmul.f32 %v304, 0.5
    %v306 = vadd.f32 %v305, 0.5
    %308 = vrot.lane.b32.xlu0 %v300, 96
    %v309 = vpop.permute.xlu0 %308
    %v311 = vmul.f32 %v306, %v309
    %313 = vrot.lane.b32.xlu0 %v311, 32
    %v314 = vpop.permute.xlu0 %313
    %v316 = vadd.f32 %v275, %v314
    %v317 = vtanh.pop %v316
    %v318 = vsub.f32 1.0, %v306
    %320 = vrot.lane.b32.xlu0 %v317, 112
    %v321 = vpop.permute.xlu0 %320
    %v323 = vmul.f32 %v318, %v321
    %v324 = vmul.f32 %v306, 0.0
    %v325 = vadd.f32 %v323, %v324
    %327 = vrot.lane.b32.xlu0 %v325, 112
    %v328 = vpop.permute.xlu0 %327
    %v329 = vsel %vm278, %v328, 0
    %331 = vmatpush.msra.mxu0 0.0
    %332 = vmatpush.msra.mxu0 0.0
    %333 = vmatpush.msra.mxu0 0.0
    %334 = vmatpush.msra.mxu0 0.0
    %335 = vmatpush.msra.mxu0 0.0
    %336 = vmatpush.msra.mxu0 0.0
    %337 = vmatpush.msra.mxu0 0.0
    %338 = vmatpush.msra.mxu0 0.0
    %339 = vmatpush.msra.mxu0 0.0
    %340 = vmatpush.msra.mxu0 0.0
    %341 = vmatpush.msra.mxu0 0.0
    %342 = vmatpush.msra.mxu0 0.0
    %343 = vmatpush.msra.mxu0 0.0
    %344 = vmatpush.msra.mxu0 0.0
    %345 = vmatpush.msra.mxu0 %v250
    %346 = vmatpush.msra.mxu0 %v249
    %347 = vmatmul.f32.gmra.mxu0 %v329
    %v348 = vpop.f32.mrf.mxu0
    %v349 = vadd.f32 %v277, %v348
    %350 = vdwg.mxu0
    %v352 = vrot.slane %v349, 6
    %v354 = vadd.f32 %v275, %v352
    %v355 = vmul.f32 %v354, 0.5
    %v356 = vtanh.pop %v355
    %v357 = vmul.f32 %v356, 0.5
    %v358 = vadd.f32 %v357, 0.5
    %359 = vrot.lane.b32.xlu0 %v352, 96
    %v360 = vpop.permute.xlu0 %359
    %v362 = vmul.f32 %v358, %v360
    %364 = vrot.lane.b32.xlu0 %v362, 32
    %v365 = vpop.permute.xlu0 %364
    %v367 = vadd.f32 %v275, %v365
    %v368 = vtanh.pop %v367
    %v369 = vsub.f32 1.0, %v358
    %371 = vrot.lane.b32.xlu0 %v368, 112
    %v372 = vpop.permute.xlu0 %371
    %v374 = vmul.f32 %v369, %v372
    %v375 = vrot.slane %v325, 6
    %v377 = vmul.f32 %v358, %v375
    %v378 = vadd.f32 %v374, %v377
    %380 = vrot.lane.b32.xlu0 %v378, 112
    %v381 = vpop.permute.xlu0 %380
    %vm383 = vcmask 125954
    %384 = vst.msk [vmem:[#allocation2 - $0x2] sm:$0xc] %vm383, %v381
    // Predicated region
    $region14: #{tpu_custom_call.1} parent=1 // pred_check
      _
    $region15: #{tpu_custom_call.1} parent=1 // pred_check_branch
      %386 = sbr.rel (0) target = $region17
    $region16: #{tpu_custom_call.1} parent=1 // pred_region
      %388 = vsyncadd [#allocation3], 0
      %s390 = sshll.u32 [#allocation2], 4
      %s391 = int_to_ptr.vmem [resolvable:$true] %s390
      %s392 = sshll.u32 %s3, 4
      %s393 = int_to_ptr.hbm [resolvable:$true] %s392
      %395 = dma.vmem_to_hbm [thread:$0]  %s391, 32, %s393, [#allocation3]
    $region17: #{tpu_custom_call.1} parent=1 // pred_fallthru
      _
    // Predicated region
    $region18: #{tpu_custom_call.1} parent=1 // pred_check
      _
    $region19: #{tpu_custom_call.1} parent=1 // pred_check_branch
      %397 = sbr.rel (0) target = $region21
    $region20: #{tpu_custom_call.1} parent=1 // pred_region
      %399 = dma.done [#allocation3], 32
    $region21: #{tpu_custom_call.1} parent=1 // pred_fallthru
      _
    %400 = vsyncpa [#allocation3], 1

</llo_original>
